<compile_context>
chip_gen: v7x
topology: tpu7x:2x2x1
jax: 0.10.0
libtpu: 0.0.40
codegen_flags: <defaults>
</compile_context>

<pallas_src>
import functools

import jax
import jax.numpy as jnp
import numpy as np
from jax.experimental import pallas as pl
from jax.experimental.pallas import tpu as pltpu

UPPER_BOUND = 1.0
NORM = False


# --------------------------------------------------------------------------
# Kernel
# --------------------------------------------------------------------------
def _loss_kernel(x_ref, t_ref, invb_ref, cw_ref, o_ref, acc_ref, *,
                 tile, tiles_per_chunk, invb_resident):
    """Per-(image, chunk, spatial-tile) relaxed-NLL partial loss.

    x_ref   : (1, C, T)       logits tile of image i
    t_ref   : (1, C, T)       relaxed multi-hot target tile (bf16, void channel dropped)
    invb_ref: (1, HW) or (1,T) sum_n 1/border_w[n] (batch-invariant)
    cw_ref  : (1, C, 1)       per-image class weights, pre-scaled by 1/denom_i
    o_ref   : (1, 1, 1)       per-(image, chunk) partial loss
    acc_ref : (1, T) f32      lane-dense running accumulator (scratch)
    """
    j = pl.program_id(2)

    @pl.when(j == 0)
    def _():
        acc_ref[...] = jnp.zeros_like(acc_ref)

    x = x_ref[0].astype(jnp.float32)          # (C, T)
    tm = t_ref[0].astype(jnp.float32)         # (C, T) relaxed multi-hot mask
    cw = cw_ref[0]                            # (C, 1) class weights * 1/denom_i

    if invb_resident:
        start = pl.multiple_of(
            (pl.program_id(1) * tiles_per_chunk + j) * tile, 128)
        invb = invb_ref[:, pl.ds(start, tile)]            # (1, T)
    else:
        invb = invb_ref[...]                              # (1, T)

    # ---- log-domain customsoftmax (no divides, no 0*inf hazard) ----
    m = jnp.max(x, axis=0, keepdims=True)                               # (1, T)
    e = jnp.exp(x - m)                                                  # (C, T)
    log_sum_e = jnp.log(jnp.sum(e, axis=0, keepdims=True))              # (1, T)
    logsoft = (x - m) - log_sum_e                                       # (C, T)
    log_msum = jnp.log(jnp.sum(e * tm, axis=0, keepdims=True)) - log_sum_e
    csm = jnp.maximum(logsoft, log_msum)                                # (C, T)

    # ---- weighted NLL contribution (per_pixel == 0 at ignore/pad pixels) ----
    per_pixel = jnp.sum(tm * cw * csm, axis=0, keepdims=True)           # (1, T)
    acc_ref[...] += invb * per_pixel

    @pl.when(j == pl.num_programs(2) - 1)
    def _():
        o_ref[0] = -jnp.sum(acc_ref[...], axis=1, keepdims=True)        # (1, 1)


# --------------------------------------------------------------------------
# Tiling / VMEM planning
# --------------------------------------------------------------------------
def _round_up(x, m):
    return (x + m - 1) // m * m


def _vmem_plan():
    """(streaming budget, vmem_limit_bytes) gated per TPU generation."""
    try:
        cap = pltpu.get_tpu_info().vmem_capacity_bytes
    except Exception:
        cap = 64 << 20                      # conservative (v7x-class)
    if cap <= (64 << 20):                   # v7x: 64 MiB physical per TC
        return 36 << 20, 52 << 20
    return 56 << 20, 96 << 20               # v5e/v6e: 128 MiB physical


def _choose_tile(hw, c, x_itemsize, t_itemsize, budget):
    """Pick lane-dense spatial tile T and padded HW.

    Per-pixel VMEM cost: 2x double-buffered block slabs (logits + target +
    streamed invb worst case) + ~6 live f32 (C, T) intermediates + (1, T)
    accumulator/temporaries.
    """
    per_pix = 2 * (c * x_itemsize + c * t_itemsize + 4) + 24 * c + 8
    max_t = max(128, (budget // per_pix) // 128 * 128)
    hw128 = _round_up(hw, 128)
    if hw128 <= max_t:
        return hw128, hw128
    # Prefer an exact divisor of HW (avoids a wrapper-side padding copy).
    if hw % 128 == 0:
        t = max_t
        while t >= max(128, max_t // 2):
            if hw % t == 0:
                return t, hw
            t -= 128
    # Otherwise split into equal ceil-sized tiles and pad (padding adds 0).
    num_tiles = -(-hw128 // max_t)
    t = _round_up(-(-hw128 // num_tiles), 128)
    return t, t * num_tiles


# --------------------------------------------------------------------------
# Wrapper (jitted so the prework reductions fuse into one read of target)
# --------------------------------------------------------------------------
@jax.jit
def img_wt_loss_soft_nll(inputs, target):
    """inputs: (N, C, H, W) logits; target: (N, C+1, H, W) relaxed labels."""
    N, C, H, W = inputs.shape
    assert target.shape == (N, C + 1, H, W)
    HW = H * W

    # ---- prework reductions over target (fused by XLA under jit) ----
    tgt = target.astype(jnp.float32)
    w = jnp.sum(tgt[:, :C], axis=1)                                 # (N, H, W)
    ignore = w == 0.0
    inv_border_sum = jnp.sum(1.0 / jnp.where(ignore, 1.0, w), axis=0)
    inv_border_sum = inv_border_sum.reshape(1, HW)                  # (1, HW)

    tot = jnp.sum(tgt, axis=(1, 2, 3))                              # (N,)
    tot = jnp.where(tot == 0.0, 1.0, tot)                           # all-void guard
    hist = jnp.sum(tgt, axis=(2, 3)) / tot[:, None]                 # (N, C+1)
    if NORM:
        cw = jnp.where(hist != 0.0, UPPER_BOUND / hist, 0.0) + 1.0
    else:
        cw = jnp.where(hist != 0.0, UPPER_BOUND * (1.0 - hist), 0.0) + 1.0
    cw = cw[:, :C]                                                  # (N, C)
    n_ignore = jnp.sum(ignore.astype(jnp.float32), axis=(1, 2))     # (N,)
    inv_denom = 1.0 / (jnp.float32(HW) - n_ignore + 1.0)
    cw_scaled = (cw * inv_denom[:, None]).reshape(N, C, 1)          # (N, C, 1)

    # ---- kernel streams: lane-dense last axis, shrunk dtypes ----
    x = inputs.reshape(N, C, HW)                                    # keep caller dtype
    t = target[:, :C].reshape(N, C, HW).astype(jnp.bfloat16)        # exact for 0/1

    budget, vmem_limit = _vmem_plan()
    hw128 = _round_up(HW, 128)
    invb_resident = (hw128 * 4) <= (4 << 20)
    if invb_resident:
        budget -= 2 * hw128 * 4          # resident invb may be double-buffered

    T, HW_pad = _choose_tile(HW, C, x.dtype.itemsize, t.dtype.itemsize, budget)
    if HW_pad != HW:
        pad = HW_pad - HW
        x = jnp.pad(x, ((0, 0), (0, 0), (0, pad)))
        t = jnp.pad(t, ((0, 0), (0, 0), (0, pad)))
        inv_border_sum = jnp.pad(inv_border_sum, ((0, 0), (0, pad)))

    num_tiles = HW_pad // T
    # Extra "parallel" spatial axis so v7x megacore is busy even for small/odd N.
    n_chunks = 2 if (num_tiles >= 2 and num_tiles % 2 == 0) else 1
    tpc = num_tiles // n_chunks

    if invb_resident:
        invb_spec = pl.BlockSpec((1, HW_pad), lambda i, c, j: (0, 0))
    else:
        invb_spec = pl.BlockSpec((1, T), lambda i, c, j: (0, c * tpc + j))

    kernel = functools.partial(
        _loss_kernel, tile=T, tiles_per_chunk=tpc, invb_resident=invb_resident)

    out = pl.pallas_call(
        kernel,
        out_shape=jax.ShapeDtypeStruct((N * n_chunks, 1, 1), jnp.float32),
        grid=(N, n_chunks, tpc),
        in_specs=[
            pl.BlockSpec((1, C, T), lambda i, c, j: (i, 0, c * tpc + j)),
            pl.BlockSpec((1, C, T), lambda i, c, j: (i, 0, c * tpc + j)),
            invb_spec,
            pl.BlockSpec((1, C, 1), lambda i, c, j: (i, 0, 0)),
        ],
        out_specs=pl.BlockSpec((1, 1, 1), lambda i, c, j: (i * n_chunks + c, 0, 0)),
        scratch_shapes=[pltpu.VMEM((1, T), jnp.float32)],
        compiler_params=pltpu.CompilerParams(
            dimension_semantics=("parallel", "parallel", "arbitrary"),
            vmem_limit_bytes=vmem_limit,
        ),
    )(x, t, inv_border_sum, cw_scaled)

    return jnp.sum(out)


# --------------------------------------------------------------------------
# Pure-numpy reference (port of the PyTorch forward, BATCH_WEIGHTING=False)
# --------------------------------------------------------------------------
def _reference_loss(inputs, target):
    inputs = np.asarray(inputs, np.float32)
    target = np.asarray(target, np.float32)
    N, C, H, W = inputs.shape
    weights = target[:, :-1].sum(1)                       # (N, H, W)
    ignore = weights == 0
    weights = np.where(ignore, 1.0, weights)
    total = np.float64(0.0)
    for i in range(N):
        t = target[i]
        hist = t.sum(axis=(1, 2)) / t.sum()
        cw = (hist != 0) * UPPER_BOUND * (1.0 - hist) + 1.0
        cw = cw[:-1]
        x = inputs[i]
        e = np.exp(x - x.max(0, keepdims=True))
        soft = e / e.sum(0, keepdims=True)
        tm = t[:-1]
        csm = np.log(np.maximum(soft, tm * (soft * tm).sum(0, keepdims=True)))
        per_pixel = (tm * cw[:, None, None] * csm).sum(0)  # (H, W)
        loss_matrix = (-1.0 / weights) * (per_pixel * (1.0 - ignore[i]))[None]
        denom = 1 * H * W - ignore[i].sum() + 1
        total += loss_matrix.sum() / denom
    return np.float32(total)


if __name__ == "__main__":
    N, C, H, W = 2, 4, 16, 16
    key = jax.random.PRNGKey(0)
    k1, k2, k3, k4 = jax.random.split(key, 4)

    inputs = jax.random.normal(k1, (N, C, H, W), dtype=jnp.float32)

    # Relaxed multi-hot target with C+1 channels (last channel acts as "void";
    # pixels whose only label is the last channel become ignore pixels).
    labels = jax.random.randint(k2, (N, H, W), 0, C + 1)
    target = jax.nn.one_hot(labels, C + 1, axis=1, dtype=jnp.float32)   # (N,C+1,H,W)
    extra = jax.random.randint(k3, (N, H, W), 0, C)
    add_mask = (jax.random.uniform(k4, (N, H, W)) < 0.25).astype(jnp.float32)
    relax = jax.nn.one_hot(extra, C + 1, axis=1, dtype=jnp.float32) * add_mask[:, None]
    target = jnp.clip(target + relax, 0.0, 1.0)

    loss = img_wt_loss_soft_nll(inputs, target)
    loss = jax.block_until_ready(loss)

    ref = _reference_loss(np.asarray(inputs), np.asarray(target))
    assert np.isfinite(float(loss))
    assert abs(float(loss) - float(ref)) <= 1e-3 * max(1.0, abs(float(ref))), (
        float(loss), float(ref))
    print("KERNEL_OK")
</pallas_src>

<mosaic_0001>
module attributes {stable_mosaic.version = 11 : i64} {
  func.func @_loss_kernel(%arg0: i32, %arg1: i32, %arg2: i32, %arg3: memref<1x4x256xf32, #tpu.memory_space<vmem>>, %arg4: memref<1x4x256xbf16, #tpu.memory_space<vmem>>, %arg5: memref<1x256xf32, #tpu.memory_space<vmem>>, %arg6: memref<1x4x1xf32, #tpu.memory_space<vmem>>, %arg7: memref<1x1x1xf32, #tpu.memory_space<vmem>>, %arg8: memref<1x256xf32, #tpu.memory_space<vmem>>) attributes {dimension_semantics = [#tpu.dimension_semantics<parallel>, #tpu.dimension_semantics<parallel>, #tpu.dimension_semantics<arbitrary>], iteration_bounds = array<i64: 2, 1, 1>, scalar_prefetch = 0 : i64, scratch_operands = 1 : i64, tpu.core_type = #tpu.core_type<tc>, window_params = [{transform_indices = @transform_0, window_bounds = array<i64: 1, 4, 256>}, {transform_indices = @transform_1, window_bounds = array<i64: 1, 4, 256>}, {pipeline_mode = #tpu.pipeline_mode<synchronous>, transform_indices = @transform_2, window_bounds = array<i64: 1, 256>}, {transform_indices = @transform_3, window_bounds = array<i64: 1, 4, 1>}, {transform_indices = @transform_4, window_bounds = array<i64: 1, 1, 1>}]} {
    %c0_i32 = arith.constant 0 : i32
    %0 = arith.cmpi eq, %arg2, %c0_i32 : i32
    %1 = arith.extui %0 : i1 to i32
    %c0_i32_0 = arith.constant 0 : i32
    %2 = arith.cmpi ne, %1, %c0_i32_0 : i32
    scf.if %2 {
      %cst_19 = arith.constant 0.000000e+00 : f32
      %47 = vector.broadcast %cst_19 : f32 to vector<1x256xf32>
      %c0_20 = arith.constant 0 : index
      %c0_21 = arith.constant 0 : index
      %48 = vector.load %arg8[%c0_20, %c0_21] : memref<1x256xf32, #tpu.memory_space<vmem>>, vector<1x256xf32>
      tpu.vector_store %arg8[%c0_20, %c0_21], %47 {strides = array<i32>} : memref<1x256xf32, #tpu.memory_space<vmem>>, vector<1x256xf32>,
    } else {
    }
    %c0 = arith.constant 0 : index
    %c0_1 = arith.constant 0 : index
    %c0_2 = arith.constant 0 : index
    %3 = vector.load %arg3[%c0, %c0_1, %c0_2] : memref<1x4x256xf32, #tpu.memory_space<vmem>>, vector<1x4x256xf32>
    %4 = vector.shape_cast %3 : vector<1x4x256xf32> to vector<4x256xf32>
    %c0_3 = arith.constant 0 : index
    %c0_4 = arith.constant 0 : index
    %c0_5 = arith.constant 0 : index
    %5 = vector.load %arg4[%c0_3, %c0_4, %c0_5] : memref<1x4x256xbf16, #tpu.memory_space<vmem>>, vector<1x4x256xbf16>
    %6 = vector.shape_cast %5 : vector<1x4x256xbf16> to vector<4x256xbf16>
    %7 = arith.extf %6 : vector<4x256xbf16> to vector<4x256xf32>
    %c0_6 = arith.constant 0 : index
    %c0_7 = arith.constant 0 : index
    %c0_8 = arith.constant 0 : index
    %8 = vector.load %arg6[%c0_6, %c0_7, %c0_8] : memref<1x4x1xf32, #tpu.memory_space<vmem>>, vector<1x4x1xf32>
    %9 = vector.shape_cast %8 : vector<1x4x1xf32> to vector<4x1xf32>
    %c1_i32 = arith.constant 1 : i32
    %10 = arith.muli %arg1, %c1_i32 : i32
    %11 = arith.addi %10, %arg2 : i32
    %c256_i32 = arith.constant 256 : i32
    %12 = arith.muli %11, %c256_i32 : i32
    %13 = tpu.assume_multiple %12, 128 : i32
    %c0_9 = arith.constant 0 : index
    %14 = arith.index_cast %13 : i32 to index
    %15 = vector.load %arg5[%c0_9, %14] : memref<1x256xf32, #tpu.memory_space<vmem>>, vector<1x256xf32>
    %cst = arith.constant dense<0xFF800000> : vector<256xf32>
    %16 = vector.multi_reduction <maximumf>, %4, %cst [0] : vector<4x256xf32> to vector<256xf32>
    %17 = vector.shape_cast %16 : vector<256xf32> to vector<1x256xf32>
    %18 = vector.broadcast %17 : vector<1x256xf32> to vector<4x256xf32>
    %19 = arith.subf %4, %18 : vector<4x256xf32>
    %20 = math.exp %19 : vector<4x256xf32>
    %cst_10 = arith.constant dense<0.000000e+00> : vector<256xf32>
    %21 = vector.multi_reduction <add>, %20, %cst_10 [0] : vector<4x256xf32> to vector<256xf32>
    %22 = vector.shape_cast %21 : vector<256xf32> to vector<1x256xf32>
    %23 = math.log %22 : vector<1x256xf32>
    %24 = vector.broadcast %17 : vector<1x256xf32> to vector<4x256xf32>
    %25 = arith.subf %4, %24 : vector<4x256xf32>
    %26 = vector.broadcast %23 : vector<1x256xf32> to vector<4x256xf32>
    %27 = arith.subf %25, %26 : vector<4x256xf32>
    %28 = arith.mulf %20, %7 : vector<4x256xf32>
    %cst_11 = arith.constant dense<0.000000e+00> : vector<256xf32>
    %29 = vector.multi_reduction <add>, %28, %cst_11 [0] : vector<4x256xf32> to vector<256xf32>
    %30 = vector.shape_cast %29 : vector<256xf32> to vector<1x256xf32>
    %31 = math.log %30 : vector<1x256xf32>
    %32 = arith.subf %31, %23 : vector<1x256xf32>
    %33 = vector.broadcast %32 : vector<1x256xf32> to vector<4x256xf32>
    %34 = arith.maximumf %27, %33 : vector<4x256xf32>
    %35 = vector.broadcast %9 : vector<4x1xf32> to vector<4x256xf32>
    %36 = arith.mulf %7, %35 : vector<4x256xf32>
    %37 = arith.mulf %36, %34 : vector<4x256xf32>
    %cst_12 = arith.constant dense<0.000000e+00> : vector<256xf32>
    %38 = vector.multi_reduction <add>, %37, %cst_12 [0] : vector<4x256xf32> to vector<256xf32>
    %39 = vector.shape_cast %38 : vector<256xf32> to vector<1x256xf32>
    %c0_13 = arith.constant 0 : index
    %c0_14 = arith.constant 0 : index
    %40 = vector.load %arg8[%c0_13, %c0_14] : memref<1x256xf32, #tpu.memory_space<vmem>>, vector<1x256xf32>
    %41 = arith.mulf %15, %39 : vector<1x256xf32>
    %42 = arith.addf %40, %41 : vector<1x256xf32>
    %c0_15 = arith.constant 0 : index
    %c0_16 = arith.constant 0 : index
    %43 = vector.load %arg8[%c0_15, %c0_16] : memref<1x256xf32, #tpu.memory_space<vmem>>, vector<1x256xf32>
    tpu.vector_store %arg8[%c0_15, %c0_16], %42 {strides = array<i32>} : memref<1x256xf32, #tpu.memory_space<vmem>>, vector<1x256xf32>,
    %c0_i32_17 = arith.constant 0 : i32
    %44 = arith.cmpi eq, %arg2, %c0_i32_17 : i32
    %45 = arith.extui %44 : i1 to i32
    %c0_i32_18 = arith.constant 0 : i32
    %46 = arith.cmpi ne, %45, %c0_i32_18 : i32
    scf.if %46 {
      %c0_19 = arith.constant 0 : index
      %c0_20 = arith.constant 0 : index
      %47 = vector.load %arg8[%c0_19, %c0_20] : memref<1x256xf32, #tpu.memory_space<vmem>>, vector<1x256xf32>
      %cst_21 = arith.constant dense<0.000000e+00> : vector<1xf32>
      %48 = vector.multi_reduction <add>, %47, %cst_21 [1] : vector<1x256xf32> to vector<1xf32>
      %49 = vector.shape_cast %48 : vector<1xf32> to vector<1x1xf32>
      %cst_22 = arith.constant 0.000000e+00 : f32
      %50 = vector.broadcast %cst_22 : f32 to vector<1x1xf32>
      %51 = arith.subf %50, %49 : vector<1x1xf32>
      %c0_23 = arith.constant 0 : index
      %c0_24 = arith.constant 0 : index
      %c0_25 = arith.constant 0 : index
      %52 = vector.load %arg7[%c0_23, %c0_24, %c0_25] : memref<1x1x1xf32, #tpu.memory_space<vmem>>, vector<1x1x1xf32>
      %53 = vector.shape_cast %52 : vector<1x1x1xf32> to vector<1x1xf32>
      %54 = vector.shape_cast %51 : vector<1x1xf32> to vector<1x1x1xf32>
      tpu.vector_store %arg7[%c0_23, %c0_24, %c0_25], %54 {strides = array<i32>} : memref<1x1x1xf32, #tpu.memory_space<vmem>>, vector<1x1x1xf32>,
    } else {
    }
    return
  }
  func.func @transform_0(%arg0: i32, %arg1: i32, %arg2: i32) -> (i32, i32, i32) {
    %c1_i32 = arith.constant 1 : i32
    %0 = arith.muli %arg1, %c1_i32 : i32
    %1 = arith.addi %0, %arg2 : i32
    %c0_i32 = arith.constant 0 : i32
    %c0_i32_0 = arith.constant 0 : i32
    return %arg0, %c0_i32, %1 : i32, i32, i32
  }
  func.func @transform_1(%arg0: i32, %arg1: i32, %arg2: i32) -> (i32, i32, i32) {
    %c1_i32 = arith.constant 1 : i32
    %0 = arith.muli %arg1, %c1_i32 : i32
    %1 = arith.addi %0, %arg2 : i32
    %c0_i32 = arith.constant 0 : i32
    %c0_i32_0 = arith.constant 0 : i32
    return %arg0, %c0_i32, %1 : i32, i32, i32
  }
  func.func @transform_2(%arg0: i32, %arg1: i32, %arg2: i32) -> (i32, i32) {
    %c0_i32 = arith.constant 0 : i32
    %c0_i32_0 = arith.constant 0 : i32
    %c0_i32_1 = arith.constant 0 : i32
    return %c0_i32, %c0_i32_0 : i32, i32
  }
  func.func @transform_3(%arg0: i32, %arg1: i32, %arg2: i32) -> (i32, i32, i32) {
    %c0_i32 = arith.constant 0 : i32
    %c0_i32_0 = arith.constant 0 : i32
    %c0_i32_1 = arith.constant 0 : i32
    return %arg0, %c0_i32, %c0_i32_0 : i32, i32, i32
  }
  func.func @transform_4(%arg0: i32, %arg1: i32, %arg2: i32) -> (i32, i32, i32) {
    %c1_i32 = arith.constant 1 : i32
    %0 = arith.muli %arg0, %c1_i32 : i32
    %1 = arith.addi %0, %arg1 : i32
    %c0_i32 = arith.constant 0 : i32
    %c0_i32_0 = arith.constant 0 : i32
    %c0_i32_1 = arith.constant 0 : i32
    return %1, %c0_i32, %c0_i32_0 : i32, i32, i32
  }
}

</mosaic_0001>

<llo_original>
// kernel: img_wt_loss_soft_nll.1
$region0: #{img_wt_loss_soft_nll.1}
  #allocation0 [shape = 'u32[]', space=smem, size = 0x4, offset = 0x4, fixed_abs, tag = 'smem constant byte address 0x4 - core index']
  #allocation1 [shape = 'u32[144,128]{1,0:T(1,128)}', space=vmem, size = 0x12000, scoped, tag = 'internal scratch']
  #allocation2 [shape = 'f32[1,256]{1,0:T(1,128)}', space=vmem, size = 0x400, scoped, tag = 'scratch operand']
  %s0 = inlined_call_operand.vmem [shape: f32[2,4,256], index: 0, kind: input, shape index: {}]
  %s1 = inlined_call_operand.vmem [shape: bf16[2,4,256], index: 1, kind: input, shape index: {}]
  %s2 = inlined_call_operand.vmem [shape: f32[1,256], index: 2, kind: input, shape index: {}]
  %s3 = inlined_call_operand.vmem [shape: f32[2,4,1], index: 3, kind: input, shape index: {}]
  %s4 = inlined_call_operand.vmem [shape: f32[2,1,1], index: 4, kind: output, shape index: {}]
  %s5 = sld [smem:[#allocation0]]
  $region57: #{img_wt_loss_soft_nll.1} parent=0
    _
  %s7 = ssub.s32 1, %s5
  %s8 = scalar_select 0, %s7, %s5
  loop: start=0, step=1, limit=4
  $region2: #{img_wt_loss_soft_nll.1} parent=0 // loop_pre_header
    _
  $region3: #{img_wt_loss_soft_nll.1} parent=0 // loop_header
    %s10 = sphi 0, %s14
    %p11 = scmp.ge.s32.totalorder %s10, 4
    %s17 = sphi 0, %s36
    %s18 = sphi 0, %s32
    %s19 = sphi 0, %s28
    %s20 = sphi 0, %s17
    %s21 = sphi 0, %s18
    %s22 = sphi 0, %s19
    %s23 = sphi 0, %s20
    %s24 = sphi 0, %s21
    %s25 = sphi 0, %s22
    %s43 = sphi 0, %s45
    %s46 = sphi 0, %s43
    %s47 = sphi 0, %s46
    %s63 = sphi 0, %s47
    %s73 = sphi 0, %s75
    %s76 = sphi 0, %s73
    %s77 = sphi 0, %s76
    %s93 = sphi 0, %s77
    %s97 = sphi 0, %s97
    %s99 = sphi 0, %s97
    %s100 = sphi 0, %s99
    %s114 = sphi 0, %s100
    %s120 = sphi 0, %s122
    %s123 = sphi 0, %s120
    %s124 = sphi 0, %s123
    %s140 = sphi 0, %s124
    %s148 = sphi 0, %s150
    %s151 = sphi 0, %s148
    %s152 = sphi 0, %s151
    %s168 = sphi 0, %s152
  $region4: #{img_wt_loss_soft_nll.1} parent=0 // loop_header_branch
    %13 = sbr.rel (%p11) target = $region8
  $region5: #{img_wt_loss_soft_nll.1} parent=0 // loop_body
    %s15 = ssub.s32 %s10, 1
    %s16 = ssub.s32 %s10, 2
    %s26 = sadd.s32 1, %s19
    %p27 = scmp.ge.s32.totalorder %s26, 1
    %s28 = scalar_select %p27, 0, %s26
    %s29 = sadd.s32 1, %s18
    %s30 = scalar_select %p27, %s29, %s18
    %p31 = scmp.ge.s32.totalorder %s30, 1
    %s32 = scalar_select %p31, 0, %s30
    %s33 = sadd.s32 1, %s17
    %s34 = scalar_select %p31, %s33, %s17
    %p35 = scmp.ge.s32.totalorder %s34, 2
    %s36 = scalar_select %p35, 0, %s34
    %s37 = sadd.s32 %s18, %s19
    %s38 = sadd.s32 %s32, %s28
    %s39 = ssub.s32 %s17, %s36
    %s40 = ssub.s32 %s37, %s38
    %s41 = sor.u32 %s39, %s40
    %p42 = scmp.eq.s32.totalorder %s41, 0
    %s44 = sadd.s32 %s43, 1
    %s45 = scalar_select %p42, %s43, %s44
    %p48 = pneg %p42
    %p49 = scmp.eq.s32.totalorder %s10, 1
    %p50 = por %p48, %p49
    %p51 = scmp.ne.s32.totalorder %s43, %s46
    %p52 = scmp.eq.s32.totalorder %s10, 0
    %p53 = por %p51, %p52
    %p54 = scmp.ne.s32.totalorder %s43, %s46
    %p55 = scmp.eq.s32.totalorder %s15, 1
    %p56 = por %p54, %p55
    %p57 = scmp.ne.s32.totalorder %s46, %s47
    %p58 = scmp.eq.s32.totalorder %s15, 0
    %p59 = por %p57, %p58
    %p60 = scmp.ne.s32.totalorder %s46, %s47
    %p61 = scmp.eq.s32.totalorder %s16, 1
    %p62 = por %p60, %p61
    %p64 = scmp.ne.s32.totalorder %s47, %s63
    %p65 = scmp.eq.s32.totalorder %s16, 0
    %p66 = por %p64, %p65
    %s67 = sadd.s32 %s18, %s19
    %s68 = sadd.s32 %s32, %s28
    %s69 = ssub.s32 %s17, %s36
    %s70 = ssub.s32 %s67, %s68
    %s71 = sor.u32 %s69, %s70
    %p72 = scmp.eq.s32.totalorder %s71, 0
    %s74 = sadd.s32 %s73, 1
    %s75 = scalar_select %p72, %s73, %s74
    %p78 = pneg %p72
    %p79 = scmp.eq.s32.totalorder %s10, 1
    %p80 = por %p78, %p79
    %p81 = scmp.ne.s32.totalorder %s73, %s76
    %p82 = scmp.eq.s32.totalorder %s10, 0
    %p83 = por %p81, %p82
    %p84 = scmp.ne.s32.totalorder %s73, %s76
    %p85 = scmp.eq.s32.totalorder %s15, 1
    %p86 = por %p84, %p85
    %p87 = scmp.ne.s32.totalorder %s76, %s77
    %p88 = scmp.eq.s32.totalorder %s15, 0
    %p89 = por %p87, %p88
    %p90 = scmp.ne.s32.totalorder %s76, %s77
    %p91 = scmp.eq.s32.totalorder %s16, 1
    %p92 = por %p90, %p91
    %p94 = scmp.ne.s32.totalorder %s77, %s93
    %p95 = scmp.eq.s32.totalorder %s16, 0
    %p96 = por %p94, %p95
    %s98 = sadd.s32 %s97, 1
    %p101 = scmp.eq.s32.totalorder %s10, 1
    %p102 = scmp.ne.s32.totalorder %s97, %s99
    %p103 = scmp.eq.s32.totalorder %s10, 0
    %p104 = por %p102, %p103
    %p105 = scmp.ne.s32.totalorder %s97, %s99
    %p106 = scmp.eq.s32.totalorder %s15, 1
    %p107 = por %p105, %p106
    %p108 = scmp.ne.s32.totalorder %s99, %s100
    %p109 = scmp.eq.s32.totalorder %s15, 0
    %p110 = por %p108, %p109
    %p111 = scmp.ne.s32.totalorder %s99, %s100
    %p112 = scmp.eq.s32.totalorder %s16, 1
    %p113 = por %p111, %p112
    %p115 = scmp.ne.s32.totalorder %s100, %s114
    %p116 = scmp.eq.s32.totalorder %s16, 0
    %p117 = por %p115, %p116
    %s118 = ssub.s32 %s17, %s36
    %p119 = scmp.eq.s32.totalorder %s118, 0
    %s121 = sadd.s32 %s120, 1
    %s122 = scalar_select %p119, %s120, %s121
    %p125 = pneg %p119
    %p126 = scmp.eq.s32.totalorder %s10, 1
    %p127 = por %p125, %p126
    %p128 = scmp.ne.s32.totalorder %s120, %s123
    %p129 = scmp.eq.s32.totalorder %s10, 0
    %p130 = por %p128, %p129
    %p131 = scmp.ne.s32.totalorder %s120, %s123
    %p132 = scmp.eq.s32.totalorder %s15, 1
    %p133 = por %p131, %p132
    %p134 = scmp.ne.s32.totalorder %s123, %s124
    %p135 = scmp.eq.s32.totalorder %s15, 0
    %p136 = por %p134, %p135
    %p137 = scmp.ne.s32.totalorder %s123, %s124
    %p138 = scmp.eq.s32.totalorder %s16, 1
    %p139 = por %p137, %p138
    %p141 = scmp.ne.s32.totalorder %s124, %s140
    %p142 = scmp.eq.s32.totalorder %s16, 0
    %p143 = por %p141, %p142
    %s144 = sadd.s32 %s17, %s18
    %s145 = sadd.s32 %s36, %s32
    %s146 = ssub.s32 %s144, %s145
    %p147 = scmp.eq.s32.totalorder %s146, 0
    %s149 = sadd.s32 %s148, 1
    %s150 = scalar_select %p147, %s148, %s149
    %p153 = pneg %p147
    %p154 = scmp.eq.s32.totalorder %s10, 1
    %p155 = por %p153, %p154
    %p156 = scmp.ne.s32.totalorder %s148, %s151
    %p157 = scmp.eq.s32.totalorder %s10, 0
    %p158 = por %p156, %p157
    %p159 = scmp.ne.s32.totalorder %s148, %s151
    %p160 = scmp.eq.s32.totalorder %s15, 1
    %p161 = por %p159, %p160
    %p162 = scmp.ne.s32.totalorder %s151, %s152
    %p163 = scmp.eq.s32.totalorder %s15, 0
    %p164 = por %p162, %p163
    %p165 = scmp.ne.s32.totalorder %s151, %s152
    %p166 = scmp.eq.s32.totalorder %s16, 1
    %p167 = por %p165, %p166
    %p169 = scmp.ne.s32.totalorder %s152, %s168
    %p170 = scmp.eq.s32.totalorder %s16, 0
    %p171 = por %p169, %p170
    %p172 = scmp.le.s32.totalorder 1, %s10
    %p173 = scmp.lt.s32.totalorder %s10, 3
    %p174 = pnand %p172, %p173
    %p175 = pneg %p174
    // Predicated region
    $region9: #{img_wt_loss_soft_nll.1} parent=5 // pred_check
      _
    $region10: #{img_wt_loss_soft_nll.1} parent=5 // pred_check_branch
      %177 = sbr.rel (%p174) target = $region12
    $region11: #{img_wt_loss_soft_nll.1} parent=5 // pred_region
      %s178 = ssub.s32 %s10, 1
      // Predicated region
      $region13: #{img_wt_loss_soft_nll.1} parent=11 // pred_check
        %p179 = pneg %p110
      $region14: #{img_wt_loss_soft_nll.1} parent=11 // pred_check_branch
        %181 = sbr.rel (%p179) target = $region16
      $region15: #{img_wt_loss_soft_nll.1} parent=11 // pred_region
        _
      $region16: #{img_wt_loss_soft_nll.1} parent=11 // pred_fallthru
        _
    $region12: #{img_wt_loss_soft_nll.1} parent=5 // pred_fallthru
      _
    %p182 = scmp.lt.s32.totalorder %s10, 2
    // Predicated region
    $region17: #{img_wt_loss_soft_nll.1} parent=5 // pred_check
      %p183 = pneg %p182
    $region18: #{img_wt_loss_soft_nll.1} parent=5 // pred_check_branch
      %185 = sbr.rel (%p183) target = $region20
    $region19: #{img_wt_loss_soft_nll.1} parent=5 // pred_region
      // Predicated region
      $region21: #{img_wt_loss_soft_nll.1} parent=19 // pred_check
        %p186 = pneg %p53
      $region22: #{img_wt_loss_soft_nll.1} parent=19 // pred_check_branch
        %188 = sbr.rel (%p186) target = $region24
      $region23: #{img_wt_loss_soft_nll.1} parent=19 // pred_region
        %s189 = sadd.s32 %s18, %s19
        %s190 = smul.u32 2, %s189
        %p191 = scmp.lt.s32.totalorder %s17, 1
        %s192 = scalar_select %p191, %s17, 1
        %p193 = scmp.lt.s32.totalorder %s190, 1
        %s194 = scalar_select %p193, %s190, 1
        %s195 = smul.addr %s192, 2
        %s196 = sadd.s32 %s194, %s195
        %s197 = smul.addr %s196, 4
        %s198 = scalar_lea.vmem %s0, %s197
        %s199 = sadd.s32 %s18, %s19
        %s200 = smul.u32 2, %s199
      $region24: #{img_wt_loss_soft_nll.1} parent=19 // pred_fallthru
        _
      // Predicated region
      $region25: #{img_wt_loss_soft_nll.1} parent=19 // pred_check
        %p201 = pneg %p83
      $region26: #{img_wt_loss_soft_nll.1} parent=19 // pred_check_branch
        %203 = sbr.rel (%p201) target = $region28
      $region27: #{img_wt_loss_soft_nll.1} parent=19 // pred_region
        %s204 = sadd.s32 %s18, %s19
        %s205 = smul.u32 2, %s204
        %p206 = scmp.lt.s32.totalorder %s17, 1
        %s207 = scalar_select %p206, %s17, 1
        %p208 = scmp.lt.s32.totalorder %s205, 1
        %s209 = scalar_select %p208, %s205, 1
        %s210 = smul.addr %s207, 2
        %s211 = sadd.s32 %s209, %s210
        %s212 = smul.addr %s211, 2
        %s213 = scalar_lea.vmem %s1, %s212
        %s214 = sadd.s32 %s18, %s19
        %s215 = smul.u32 2, %s214
      $region28: #{img_wt_loss_soft_nll.1} parent=19 // pred_fallthru
        _
      // Predicated region
      $region29: #{img_wt_loss_soft_nll.1} parent=19 // pred_check
        %p216 = pneg %p130
      $region30: #{img_wt_loss_soft_nll.1} parent=19 // pred_check_branch
        %218 = sbr.rel (%p216) target = $region32
      $region31: #{img_wt_loss_soft_nll.1} parent=19 // pred_region
        %p219 = scmp.lt.s32.totalorder %s17, 1
        %s220 = scalar_select %p219, %s17, 1
        %s221 = smul.addr %s220, 4
        %s222 = scalar_lea.vmem %s3, %s221
      $region32: #{img_wt_loss_soft_nll.1} parent=19 // pred_fallthru
        _
    $region20: #{img_wt_loss_soft_nll.1} parent=5 // pred_fallthru
      _
    %p223 = scmp.le.s32.totalorder 1, %s10
    %p224 = scmp.lt.s32.totalorder %s10, 3
    %p225 = pnand %p223, %p224
    %p226 = pneg %p225
    // Predicated region
    $region33: #{img_wt_loss_soft_nll.1} parent=5 // pred_check
      _
    $region34: #{img_wt_loss_soft_nll.1} parent=5 // pred_check_branch
      %228 = sbr.rel (%p225) target = $region36
    $region35: #{img_wt_loss_soft_nll.1} parent=5 // pred_region
      %s229 = ssub.s32 %s10, 1
      %s230 = sadd.s32 %s21, %s22
      %s231 = smul.u32 2, %s230
      %p232 = scmp.lt.s32.totalorder %s20, 1
      %s233 = scalar_select %p232, %s20, 1
      %p234 = scmp.lt.s32.totalorder %s231, 1
      %s235 = scalar_select %p234, %s231, 1
      %s236 = smul.addr %s233, 2
      %s237 = sadd.s32 %s235, %s236
      %s238 = smul.addr %s237, 4
      %s239 = scalar_lea.vmem %s0, %s238
      %p240 = pneg %p59
      %p241 = pneg %p56
      %s242 = sadd.s32 %s21, %s22
      %s243 = smul.u32 2, %s242
      %p244 = scmp.lt.s32.totalorder %s20, 1
      %s245 = scalar_select %p244, %s20, 1
      %p246 = scmp.lt.s32.totalorder %s243, 1
      %s247 = scalar_select %p246, %s243, 1
      %s248 = smul.addr %s245, 2
      %s249 = sadd.s32 %s247, %s248
      %s250 = smul.addr %s249, 2
      %s251 = scalar_lea.vmem %s1, %s250
      %p252 = pneg %p89
      %p253 = pneg %p86
      %p254 = pneg %p110
      %p255 = pneg %p107
      %p256 = scmp.lt.s32.totalorder %s20, 1
      %s257 = scalar_select %p256, %s20, 1
      %s258 = smul.addr %s257, 4
      %s259 = scalar_lea.vmem %s3, %s258
      %p260 = pneg %p136
      %p261 = pneg %p133
      %p262 = pneg %p164
      %p263 = pneg %p161
      %s264 = sadd.s32 %s20, %s21
      %p265 = scmp.lt.s32.totalorder %s264, 1
      %s266 = scalar_select %p265, %s264, 1
      %s267 = scalar_lea.vmem %s4, %s266
      %s268 = sadd.s32 %s21, %s22
      %s269 = smul.u32 2, %s268
      %p270 = scmp.lt.s32.totalorder %s20, 1
      %s271 = scalar_select %p270, %s20, 1
      %p272 = scmp.lt.s32.totalorder %s269, 1
      %s273 = scalar_select %p272, %s269, 1
      %s274 = smul.addr %s271, 2
      %s275 = sadd.s32 %s273, %s274
      %s276 = smul.addr %s275, 4
      %s277 = scalar_lea.vmem %s0, %s276
      %s278 = sadd.s32 %s21, %s22
      %s279 = smul.u32 2, %s278
      %s280 = sadd.s32 %s21, %s22
      %s281 = smul.u32 2, %s280
      %p282 = scmp.lt.s32.totalorder %s20, 1
      %s283 = scalar_select %p282, %s20, 1
      %p284 = scmp.lt.s32.totalorder %s281, 1
      %s285 = scalar_select %p284, %s281, 1
      %s286 = smul.addr %s283, 2
      %s287 = sadd.s32 %s285, %s286
      %s288 = smul.addr %s287, 2
      %s289 = scalar_lea.vmem %s1, %s288
      %s290 = sadd.s32 %s21, %s22
      %s291 = smul.u32 2, %s290
      %p292 = scmp.lt.s32.totalorder %s20, 1
      %s293 = scalar_select %p292, %s20, 1
      %s294 = smul.addr %s293, 4
      %s295 = scalar_lea.vmem %s3, %s294
      %s296 = sadd.s32 %s20, %s21
      %p297 = scmp.lt.s32.totalorder %s296, 1
      %s298 = scalar_select %p297, %s296, 1
      %s299 = scalar_lea.vmem %s4, %s298
      %s300 = sadd.s32 %s20, %s21
      %p301 = scmp.eq.s32.totalorder %s22, 0
      // Predicated region
      $region37: #{img_wt_loss_soft_nll.1} parent=35 // pred_check
        %p302 = pneg %p301
      $region38: #{img_wt_loss_soft_nll.1} parent=35 // pred_check_branch
        %304 = sbr.rel (%p302) target = $region40
      $region39: #{img_wt_loss_soft_nll.1} parent=35 // pred_region
        %v305 = vlaneseq
        %vm306 = vcmp.ge.s32.totalorder %v305, 0
        %vm307 = vcmp.lt.s32.totalorder %v305, 256
        %vm308 = vmand %vm306, %vm307
        %309 = vst.msk [vmem:[#allocation2] sm:$0x3] %vm308, 0.0
      $region40: #{img_wt_loss_soft_nll.1} parent=35 // pred_fallthru
        _
      %v310 = vld [vmem:[%s277] sm:$0xff]
      %v311 = vld [vmem:[%s289] sm:$0xf]
      %v312 = vunpack.c.l.bf16 %v311
      %v313 = vld [vmem:[%s295] sm:$0xf]
      %s314 = sadd.s32 %s21, %s22
      %s315 = smul.u32 %s314, 256
      %s316 = sshra.s32 %s315, 7
      %s317 = sand.u32 %s315, 127
      %s318 = scalar_lea.vmem %s2, %s316
      %v319 = vld [vmem:[%s318] sm:$0x3]
      %v321 = vcombine.high %v310, %v310
      %vm323 = vcmask 1043456
      %v324 = vsel %vm323, %v310, -inf
      %v325 = vrot.slane %v324, 4
      %v326 = vmax.f32 %v324, %v325
      %v327 = vrot.slane %v326, 2
      %v328 = vmax.f32 %v326, %v327
      %v329 = vrot.slane %v328, 1
      %v330 = vmax.f32 %v328, %v329
      %v331 = vsel %vm323, %v321, -inf
      %v332 = vrot.slane %v331, 4
      %v333 = vmax.f32 %v331, %v332
      %v334 = vrot.slane %v333, 2
      %v335 = vmax.f32 %v333, %v334
      %v336 = vrot.slane %v335, 1
      %v337 = vmax.f32 %v335, %v336
      %v340 = vcombine.low %v330, %v337
      %v342 = vsub.f32 %v310, %v340
      %v343 = vmul.f32 %v342, 1.442695
      %v344 = vpow.pop %v343
      %v346 = vcombine.high %v344, %v344
      %v348 = vsel %vm323, %v344, 0.0
      %v349 = vrot.slane %v348, 4
      %v350 = vadd.f32 %v348, %v349
      %v351 = vrot.slane %v350, 2
      %v352 = vadd.f32 %v350, %v351
      %v353 = vrot.slane %v352, 1
      %v354 = vadd.f32 %v352, %v353
      %v355 = vsel %vm323, %v346, 0.0
      %v356 = vrot.slane %v355, 4
      %v357 = vadd.f32 %v355, %v356
      %v358 = vrot.slane %v357, 2
      %v359 = vadd.f32 %v357, %v358
      %v360 = vrot.slane %v359, 1
      %v361 = vadd.f32 %v359, %v360
      %v362 = vlog2.pop %v354
      %v363 = vmul.f32 %v362, 0.6931472
      %v364 = vlog2.pop %v361
      %v365 = vmul.f32 %v364, 0.6931472
      %v368 = vcombine.low %v363, %v365
      %v370 = vsub.f32 %v342, %v368
      %v371 = vmul.f32 %v344, %v312
      %v373 = vcombine.high %v371, %v371
      %v375 = vsel %vm323, %v371, 0.0
      %v376 = vrot.slane %v375, 4
      %v377 = vadd.f32 %v375, %v376
      %v378 = vrot.slane %v377, 2
      %v379 = vadd.f32 %v377, %v378
      %v380 = vrot.slane %v379, 1
      %v381 = vadd.f32 %v379, %v380
      %v382 = vsel %vm323, %v373, 0.0
      %v383 = vrot.slane %v382, 4
      %v384 = vadd.f32 %v382, %v383
      %v385 = vrot.slane %v384, 2
      %v386 = vadd.f32 %v384, %v385
      %v387 = vrot.slane %v386, 1
      %v388 = vadd.f32 %v386, %v387
      %v389 = vlog2.pop %v381
      %v390 = vmul.f32 %v389, 0.6931472
      %v391 = vlog2.pop %v388
      %v392 = vmul.f32 %v391, 0.6931472
      %v393 = vsub.f32 %v390, %v363
      %v394 = vsub.f32 %v392, %v365
      %v397 = vcombine.low %v393, %v394
      %v399 = vmax.f32 %v370, %v397
      %401 = vset.pattern.permute.xlu0 0
      %402 = vperm.xlu0 %401, %v313
      %v403 = vpop.permute.xlu0 %402
      %v405 = vunpack.c.l.s4 839922192
      %v406 = vunpack.c.0.s8 %v405
      %v407 = vlaneseq
      %v408 = vshrl.u32 %v407, 7
      %v409 = vsub.s32 %v406, %v408
      %v410 = vrot.slane %v403, %v409
      %v412 = vmul.f32 %v312, %v410
      %v413 = vmul.f32 %v412, %v399
      %v415 = vcombine.high %v413, %v413
      %v417 = vsel %vm323, %v413, 0.0
      %v418 = vrot.slane %v417, 4
      %v419 = vadd.f32 %v417, %v418
      %v420 = vrot.slane %v419, 2
      %v421 = vadd.f32 %v419, %v420
      %v422 = vrot.slane %v421, 1
      %v423 = vadd.f32 %v421, %v422
      %v424 = vsel %vm323, %v415, 0.0
      %v425 = vrot.slane %v424, 4
      %v426 = vadd.f32 %v424, %v425
      %v427 = vrot.slane %v426, 2
      %v428 = vadd.f32 %v426, %v427
      %v429 = vrot.slane %v428, 1
      %v430 = vadd.f32 %v428, %v429
      %v431 = vld [vmem:[#allocation2] sm:$0x3]
      %v434 = vcombine.low %v423, %v430
      %v436 = vunpack.c.l.s4 1966171168
      %v437 = vunpack.c.0.s8 %v436
      %v438 = vlaneseq
      %v439 = vshrl.u32 %v438, 7
      %v440 = vsub.s32 %v437, %v439
      %v441 = vrot.slane %v434, %v440
      %v443 = vunpack.c.l.s4 1966171168
      %v444 = vunpack.c.0.s8 %v443
      %v445 = vlaneseq
      %v446 = vshrl.u32 %v445, 7
      %v447 = vsub.s32 %v444, %v446
      %v448 = vrot.slane %v441, %v447
      %v450 = vmul.f32 %v319, %v448
      %v451 = vadd.f32 %v431, %v450
      %v452 = vlaneseq
      %vm453 = vcmp.ge.s32.totalorder %v452, 0
      %vm454 = vcmp.lt.s32.totalorder %v452, 256
      %vm455 = vmand %vm453, %vm454
      %456 = vst.msk [vmem:[#allocation2] sm:$0x3] %vm455, %v451
      // Predicated region
      $region41: #{img_wt_loss_soft_nll.1} parent=35 // pred_check
        %p457 = pneg %p301
      $region42: #{img_wt_loss_soft_nll.1} parent=35 // pred_check_branch
        %459 = sbr.rel (%p457) target = $region44
      $region43: #{img_wt_loss_soft_nll.1} parent=35 // pred_region
        %v460 = vld [vmem:[#allocation2] sm:$0x3]
        %v462 = vlaneseq
        %v463 = vshrl.u32 %v462, 7
        %v464 = vsub.s32 0, %v463
        %v465 = vrot.slane %v460, %v464
        %v466 = vlaneseq
        %v467 = vshrl.u32 %v466, 7
        %v468 = vsub.s32 1, %v467
        %v469 = vrot.slane %v460, %v468
        %vm472 = vcmask 1040384
        %v473 = vsel %vm472, %v465, 0.0
        %v474 = vsel %vm472, %v469, 0.0
        %v475 = vadd.f32 %v473, %v474
        %476 = vadd.xlane.f32.xlu0 %v475
        %v477 = vpop.xlane.xlu0 %476
        %v478 = vsub.f32 0.0, %v477
        %vm479 = vcmask 0
        %480 = vst.msk [vmem:[%s299] sm:$0x1] %vm479, %v478
      $region44: #{img_wt_loss_soft_nll.1} parent=35 // pred_fallthru
        _
      %s481 = sadd.s32 %s20, %s21
      %p482 = scmp.lt.s32.totalorder %s481, 1
      %s483 = scalar_select %p482, %s481, 1
      %s484 = scalar_lea.vmem %s4, %s483
      // Predicated region
      $region45: #{img_wt_loss_soft_nll.1} parent=35 // pred_check
        %p485 = pneg %p161
      $region46: #{img_wt_loss_soft_nll.1} parent=35 // pred_check_branch
        %487 = sbr.rel (%p485) target = $region48
      $region47: #{img_wt_loss_soft_nll.1} parent=35 // pred_region
        %s488 = sadd.s32 %s20, %s21
      $region48: #{img_wt_loss_soft_nll.1} parent=35 // pred_fallthru
        _
    $region36: #{img_wt_loss_soft_nll.1} parent=5 // pred_fallthru
      _
    %p489 = scmp.le.s32.totalorder 2, %s10
    // Predicated region
    $region49: #{img_wt_loss_soft_nll.1} parent=5 // pred_check
      %p490 = pneg %p489
    $region50: #{img_wt_loss_soft_nll.1} parent=5 // pred_check_branch
      %492 = sbr.rel (%p490) target = $region52
    $region51: #{img_wt_loss_soft_nll.1} parent=5 // pred_region
      %s493 = ssub.s32 %s10, 2
      // Predicated region
      $region53: #{img_wt_loss_soft_nll.1} parent=51 // pred_check
        %p494 = pneg %p167
      $region54: #{img_wt_loss_soft_nll.1} parent=51 // pred_check_branch
        %496 = sbr.rel (%p494) target = $region56
      $region55: #{img_wt_loss_soft_nll.1} parent=51 // pred_region
        %s497 = sadd.s32 %s23, %s24
        %p498 = scmp.lt.s32.totalorder %s497, 1
        %s499 = scalar_select %p498, %s497, 1
        %s500 = scalar_lea.vmem %s4, %s499
      $region56: #{img_wt_loss_soft_nll.1} parent=51 // pred_fallthru
        _
    $region52: #{img_wt_loss_soft_nll.1} parent=5 // pred_fallthru
      _
  $region6: #{img_wt_loss_soft_nll.1} parent=0 // loop_footer
    %s14 = sadd.s32 1, %s10
  $region7: #{img_wt_loss_soft_nll.1} parent=0 // loop_footer_branch
    %9 = sbr.rel target = $region3
  $region8: #{img_wt_loss_soft_nll.1} parent=0 // loop_exit
    _

</llo_original>
